<compile_context>
chip_gen: v5e
topology: v5e:2x2
jax: 0.10.0
libtpu: 0.0.40
codegen_flags: <defaults>
</compile_context>

<pallas_src>
import jax
import jax.numpy as jnp
from jax.experimental import pallas as pl
from jax.experimental.pallas import tpu as pltpu

K = 3  # kernel_size
S = 3  # stride (MaxPool2d default: stride = kernel_size)


def _pool_out_size(n):
    # ceil_mode output size for padding=0, dilation=1, plus PyTorch's rule that
    # the last window must start inside the input (not in implicit padding).
    o = -(-(n - K) // S) + 1
    if (o - 1) * S >= n:
        o -= 1
    return o


def _make_kernel(tb, h, w, ho, wo, dtype):
    # -inf is the true identity for max; ceil_mode guarantees every window has
    # at least one valid element, so it never escapes.  Integer dtypes fall
    # back to iinfo.min.
    if jnp.issubdtype(dtype, jnp.floating):
        neg = float("-inf")
    else:
        neg = int(jnp.iinfo(dtype).min)

    wpad = w + (K - 1)  # scratch width incl. ceil_mode right-edge pad columns

    def kernel(x_ref, o_ref, mh_ref):
        # x_ref : (tb, h, w)      input tile  (W on lanes, H on sublanes)
        # o_ref : (tb, ho, wo)    pooled output tile
        # mh_ref: (tb, ho, wpad)  scratch: per-output-row max over kh

        # Right-edge pad columns (identity for max) — handles ceil_mode along W.
        mh_ref[:, :, w:] = jnp.full((tb, ho, K - 1), neg, dtype)

        # Stage 1: reduce over kh (row direction) with static integer row
        # indices -> contiguous, lane-dense (tb, w) tiles; bottom ragged window
        # handled by simply skipping out-of-range rows.
        for oh in range(ho):
            r0 = oh * S
            acc = x_ref[:, r0, :]
            for kh in range(1, K):
                if r0 + kh < h:
                    acc = jnp.maximum(acc, x_ref[:, r0 + kh, :])
            mh_ref[:, oh, :w] = acc

        # Stage 2: reduce over kw with K shifted *contiguous* lane slices of the
        # padded scratch (pure VPU maxima, no strided / middle-dim slicing).
        # t[:, :, c] = max of the window starting at column c.
        t = mh_ref[:, :, 0:w]
        for kw in range(1, K):
            t = jnp.maximum(t, mh_ref[:, :, kw:kw + w])

        # Stage 3: compact the stride-S window starts into the output block.
        # Wo narrow column copies, bounded by the (9x smaller) output size.
        for ow in range(wo):
            o_ref[:, :, ow:ow + 1] = t[:, :, ow * S:ow * S + 1]

    return kernel


def maxpool2d_ceil(x):
    """MaxPool2d(kernel_size=3, ceil_mode=True) on an NCHW array via Pallas."""
    n, c, h, w = x.shape
    ho, wo = _pool_out_size(h), _pool_out_size(w)
    nc = n * c
    dtype = x.dtype
    itemsize = jnp.dtype(dtype).itemsize

    # Free reshape (leading-dim merge, no HBM traffic): pooling is independent
    # per (n, c) image.
    x3 = x.reshape(nc, h, w)

    # Tile the image-stack axis: ~2 MiB input blocks keep double-buffered
    # in/out + scratch far under the default scoped VMEM on all generations
    # (16 MiB v5e, 32 MiB v6e/v7x) while giving real DMA/compute overlap.
    per_img = h * w * itemsize
    tb = max(1, min(nc, (2 << 20) // max(per_img, 1)))
    if tb >= 8:
        tb = (tb // 8) * 8
    grid = (pl.cdiv(nc, tb),)

    kernel = _make_kernel(tb, h, w, ho, wo, dtype)

    out_elems = nc * ho * wo
    cost = pl.CostEstimate(
        flops=(K * K - 1) * out_elems,
        transcendentals=0,
        bytes_accessed=int(x3.size * itemsize + out_elems * itemsize),
    )

    out3 = pl.pallas_call(
        kernel,
        out_shape=jax.ShapeDtypeStruct((nc, ho, wo), dtype),
        grid=grid,
        in_specs=[pl.BlockSpec((tb, h, w), lambda i: (i, 0, 0))],
        out_specs=pl.BlockSpec((tb, ho, wo), lambda i: (i, 0, 0)),
        scratch_shapes=[pltpu.VMEM((tb, ho, w + K - 1), dtype)],
        compiler_params=pltpu.CompilerParams(
            dimension_semantics=("parallel",)),
        cost_estimate=cost,
    )(x3)

    return out3.reshape(n, c, ho, wo)


def _reference(x):
    # Pure-JAX reference: reduce_window with high-side -inf padding reproduces
    # MaxPool2d(kernel_size=3, ceil_mode=True).
    _, _, h, w = x.shape
    ho, wo = _pool_out_size(h), _pool_out_size(w)
    pad_h = (ho - 1) * S + K - h
    pad_w = (wo - 1) * S + K - w
    return jax.lax.reduce_window(
        x, -jnp.inf, jax.lax.max,
        window_dimensions=(1, 1, K, K),
        window_strides=(1, 1, S, S),
        padding=[(0, 0), (0, 0), (0, pad_h), (0, pad_w)],
    )


if __name__ == "__main__":
    key = jax.random.PRNGKey(0)
    x = jax.random.normal(key, (2, 4, 16, 16), dtype=jnp.float32)  # NCHW

    out = jax.block_until_ready(maxpool2d_ceil(x))

    assert out.shape == (2, 4, 6, 6), out.shape
    ref = _reference(x)
    assert jnp.allclose(out, ref), "mismatch vs reference maxpool"

    print("KERNEL_OK")
</pallas_src>

<mosaic_0001>
module attributes {stable_mosaic.version = 11 : i64} {
  func.func @kernel(%arg0: i32, %arg1: memref<8x16x16xf32, #tpu.memory_space<vmem>>, %arg2: memref<8x6x6xf32, #tpu.memory_space<vmem>>, %arg3: memref<8x6x18xf32, #tpu.memory_space<vmem>>) attributes {dimension_semantics = [#tpu.dimension_semantics<parallel>], iteration_bounds = array<i64: 1>, scalar_prefetch = 0 : i64, scratch_operands = 1 : i64, tpu.core_type = #tpu.core_type<tc>, window_params = [{transform_indices = @transform_0, window_bounds = array<i64: 8, 16, 16>}, {transform_indices = @transform_1, window_bounds = array<i64: 8, 6, 6>}]} {
    %cst = arith.constant 0xFF800000 : f32
    %0 = vector.broadcast %cst : f32 to vector<8x6x2xf32>
    %c0 = arith.constant 0 : index
    %c0_0 = arith.constant 0 : index
    %c16 = arith.constant 16 : index
    %1 = vector.load %arg3[%c0, %c0_0, %c16] : memref<8x6x18xf32, #tpu.memory_space<vmem>>, vector<8x6x2xf32>
    tpu.vector_store %arg3[%c0, %c0_0, %c16], %0 {strides = array<i32>} : memref<8x6x18xf32, #tpu.memory_space<vmem>>, vector<8x6x2xf32>,
    %c0_1 = arith.constant 0 : index
    %c0_2 = arith.constant 0 : index
    %c0_3 = arith.constant 0 : index
    %2 = vector.load %arg1[%c0_1, %c0_2, %c0_3] : memref<8x16x16xf32, #tpu.memory_space<vmem>>, vector<8x1x16xf32>
    %3 = vector.shape_cast %2 : vector<8x1x16xf32> to vector<8x16xf32>
    %c0_4 = arith.constant 0 : index
    %c1 = arith.constant 1 : index
    %c0_5 = arith.constant 0 : index
    %4 = vector.load %arg1[%c0_4, %c1, %c0_5] : memref<8x16x16xf32, #tpu.memory_space<vmem>>, vector<8x1x16xf32>
    %5 = vector.shape_cast %4 : vector<8x1x16xf32> to vector<8x16xf32>
    %6 = arith.maximumf %3, %5 : vector<8x16xf32>
    %c0_6 = arith.constant 0 : index
    %c2 = arith.constant 2 : index
    %c0_7 = arith.constant 0 : index
    %7 = vector.load %arg1[%c0_6, %c2, %c0_7] : memref<8x16x16xf32, #tpu.memory_space<vmem>>, vector<8x1x16xf32>
    %8 = vector.shape_cast %7 : vector<8x1x16xf32> to vector<8x16xf32>
    %9 = arith.maximumf %6, %8 : vector<8x16xf32>
    %c0_8 = arith.constant 0 : index
    %c0_9 = arith.constant 0 : index
    %c0_10 = arith.constant 0 : index
    %10 = vector.load %arg3[%c0_8, %c0_9, %c0_10] : memref<8x6x18xf32, #tpu.memory_space<vmem>>, vector<8x1x16xf32>
    %11 = vector.shape_cast %10 : vector<8x1x16xf32> to vector<8x16xf32>
    %12 = vector.shape_cast %9 : vector<8x16xf32> to vector<8x1x16xf32>
    tpu.vector_store %arg3[%c0_8, %c0_9, %c0_10], %12 {strides = array<i32>} : memref<8x6x18xf32, #tpu.memory_space<vmem>>, vector<8x1x16xf32>,
    %c0_11 = arith.constant 0 : index
    %c3 = arith.constant 3 : index
    %c0_12 = arith.constant 0 : index
    %13 = vector.load %arg1[%c0_11, %c3, %c0_12] : memref<8x16x16xf32, #tpu.memory_space<vmem>>, vector<8x1x16xf32>
    %14 = vector.shape_cast %13 : vector<8x1x16xf32> to vector<8x16xf32>
    %c0_13 = arith.constant 0 : index
    %c4 = arith.constant 4 : index
    %c0_14 = arith.constant 0 : index
    %15 = vector.load %arg1[%c0_13, %c4, %c0_14] : memref<8x16x16xf32, #tpu.memory_space<vmem>>, vector<8x1x16xf32>
    %16 = vector.shape_cast %15 : vector<8x1x16xf32> to vector<8x16xf32>
    %17 = arith.maximumf %14, %16 : vector<8x16xf32>
    %c0_15 = arith.constant 0 : index
    %c5 = arith.constant 5 : index
    %c0_16 = arith.constant 0 : index
    %18 = vector.load %arg1[%c0_15, %c5, %c0_16] : memref<8x16x16xf32, #tpu.memory_space<vmem>>, vector<8x1x16xf32>
    %19 = vector.shape_cast %18 : vector<8x1x16xf32> to vector<8x16xf32>
    %20 = arith.maximumf %17, %19 : vector<8x16xf32>
    %c0_17 = arith.constant 0 : index
    %c1_18 = arith.constant 1 : index
    %c0_19 = arith.constant 0 : index
    %21 = vector.load %arg3[%c0_17, %c1_18, %c0_19] : memref<8x6x18xf32, #tpu.memory_space<vmem>>, vector<8x1x16xf32>
    %22 = vector.shape_cast %21 : vector<8x1x16xf32> to vector<8x16xf32>
    %23 = vector.shape_cast %20 : vector<8x16xf32> to vector<8x1x16xf32>
    tpu.vector_store %arg3[%c0_17, %c1_18, %c0_19], %23 {strides = array<i32>} : memref<8x6x18xf32, #tpu.memory_space<vmem>>, vector<8x1x16xf32>,
    %c0_20 = arith.constant 0 : index
    %c6 = arith.constant 6 : index
    %c0_21 = arith.constant 0 : index
    %24 = vector.load %arg1[%c0_20, %c6, %c0_21] : memref<8x16x16xf32, #tpu.memory_space<vmem>>, vector<8x1x16xf32>
    %25 = vector.shape_cast %24 : vector<8x1x16xf32> to vector<8x16xf32>
    %c0_22 = arith.constant 0 : index
    %c7 = arith.constant 7 : index
    %c0_23 = arith.constant 0 : index
    %26 = vector.load %arg1[%c0_22, %c7, %c0_23] : memref<8x16x16xf32, #tpu.memory_space<vmem>>, vector<8x1x16xf32>
    %27 = vector.shape_cast %26 : vector<8x1x16xf32> to vector<8x16xf32>
    %28 = arith.maximumf %25, %27 : vector<8x16xf32>
    %c0_24 = arith.constant 0 : index
    %c8 = arith.constant 8 : index
    %c0_25 = arith.constant 0 : index
    %29 = vector.load %arg1[%c0_24, %c8, %c0_25] : memref<8x16x16xf32, #tpu.memory_space<vmem>>, vector<8x1x16xf32>
    %30 = vector.shape_cast %29 : vector<8x1x16xf32> to vector<8x16xf32>
    %31 = arith.maximumf %28, %30 : vector<8x16xf32>
    %c0_26 = arith.constant 0 : index
    %c2_27 = arith.constant 2 : index
    %c0_28 = arith.constant 0 : index
    %32 = vector.load %arg3[%c0_26, %c2_27, %c0_28] : memref<8x6x18xf32, #tpu.memory_space<vmem>>, vector<8x1x16xf32>
    %33 = vector.shape_cast %32 : vector<8x1x16xf32> to vector<8x16xf32>
    %34 = vector.shape_cast %31 : vector<8x16xf32> to vector<8x1x16xf32>
    tpu.vector_store %arg3[%c0_26, %c2_27, %c0_28], %34 {strides = array<i32>} : memref<8x6x18xf32, #tpu.memory_space<vmem>>, vector<8x1x16xf32>,
    %c0_29 = arith.constant 0 : index
    %c9 = arith.constant 9 : index
    %c0_30 = arith.constant 0 : index
    %35 = vector.load %arg1[%c0_29, %c9, %c0_30] : memref<8x16x16xf32, #tpu.memory_space<vmem>>, vector<8x1x16xf32>
    %36 = vector.shape_cast %35 : vector<8x1x16xf32> to vector<8x16xf32>
    %c0_31 = arith.constant 0 : index
    %c10 = arith.constant 10 : index
    %c0_32 = arith.constant 0 : index
    %37 = vector.load %arg1[%c0_31, %c10, %c0_32] : memref<8x16x16xf32, #tpu.memory_space<vmem>>, vector<8x1x16xf32>
    %38 = vector.shape_cast %37 : vector<8x1x16xf32> to vector<8x16xf32>
    %39 = arith.maximumf %36, %38 : vector<8x16xf32>
    %c0_33 = arith.constant 0 : index
    %c11 = arith.constant 11 : index
    %c0_34 = arith.constant 0 : index
    %40 = vector.load %arg1[%c0_33, %c11, %c0_34] : memref<8x16x16xf32, #tpu.memory_space<vmem>>, vector<8x1x16xf32>
    %41 = vector.shape_cast %40 : vector<8x1x16xf32> to vector<8x16xf32>
    %42 = arith.maximumf %39, %41 : vector<8x16xf32>
    %c0_35 = arith.constant 0 : index
    %c3_36 = arith.constant 3 : index
    %c0_37 = arith.constant 0 : index
    %43 = vector.load %arg3[%c0_35, %c3_36, %c0_37] : memref<8x6x18xf32, #tpu.memory_space<vmem>>, vector<8x1x16xf32>
    %44 = vector.shape_cast %43 : vector<8x1x16xf32> to vector<8x16xf32>
    %45 = vector.shape_cast %42 : vector<8x16xf32> to vector<8x1x16xf32>
    tpu.vector_store %arg3[%c0_35, %c3_36, %c0_37], %45 {strides = array<i32>} : memref<8x6x18xf32, #tpu.memory_space<vmem>>, vector<8x1x16xf32>,
    %c0_38 = arith.constant 0 : index
    %c12 = arith.constant 12 : index
    %c0_39 = arith.constant 0 : index
    %46 = vector.load %arg1[%c0_38, %c12, %c0_39] : memref<8x16x16xf32, #tpu.memory_space<vmem>>, vector<8x1x16xf32>
    %47 = vector.shape_cast %46 : vector<8x1x16xf32> to vector<8x16xf32>
    %c0_40 = arith.constant 0 : index
    %c13 = arith.constant 13 : index
    %c0_41 = arith.constant 0 : index
    %48 = vector.load %arg1[%c0_40, %c13, %c0_41] : memref<8x16x16xf32, #tpu.memory_space<vmem>>, vector<8x1x16xf32>
    %49 = vector.shape_cast %48 : vector<8x1x16xf32> to vector<8x16xf32>
    %50 = arith.maximumf %47, %49 : vector<8x16xf32>
    %c0_42 = arith.constant 0 : index
    %c14 = arith.constant 14 : index
    %c0_43 = arith.constant 0 : index
    %51 = vector.load %arg1[%c0_42, %c14, %c0_43] : memref<8x16x16xf32, #tpu.memory_space<vmem>>, vector<8x1x16xf32>
    %52 = vector.shape_cast %51 : vector<8x1x16xf32> to vector<8x16xf32>
    %53 = arith.maximumf %50, %52 : vector<8x16xf32>
    %c0_44 = arith.constant 0 : index
    %c4_45 = arith.constant 4 : index
    %c0_46 = arith.constant 0 : index
    %54 = vector.load %arg3[%c0_44, %c4_45, %c0_46] : memref<8x6x18xf32, #tpu.memory_space<vmem>>, vector<8x1x16xf32>
    %55 = vector.shape_cast %54 : vector<8x1x16xf32> to vector<8x16xf32>
    %56 = vector.shape_cast %53 : vector<8x16xf32> to vector<8x1x16xf32>
    tpu.vector_store %arg3[%c0_44, %c4_45, %c0_46], %56 {strides = array<i32>} : memref<8x6x18xf32, #tpu.memory_space<vmem>>, vector<8x1x16xf32>,
    %c0_47 = arith.constant 0 : index
    %c15 = arith.constant 15 : index
    %c0_48 = arith.constant 0 : index
    %57 = vector.load %arg1[%c0_47, %c15, %c0_48] : memref<8x16x16xf32, #tpu.memory_space<vmem>>, vector<8x1x16xf32>
    %58 = vector.shape_cast %57 : vector<8x1x16xf32> to vector<8x16xf32>
    %c0_49 = arith.constant 0 : index
    %c5_50 = arith.constant 5 : index
    %c0_51 = arith.constant 0 : index
    %59 = vector.load %arg3[%c0_49, %c5_50, %c0_51] : memref<8x6x18xf32, #tpu.memory_space<vmem>>, vector<8x1x16xf32>
    %60 = vector.shape_cast %59 : vector<8x1x16xf32> to vector<8x16xf32>
    %61 = vector.shape_cast %58 : vector<8x16xf32> to vector<8x1x16xf32>
    tpu.vector_store %arg3[%c0_49, %c5_50, %c0_51], %61 {strides = array<i32>} : memref<8x6x18xf32, #tpu.memory_space<vmem>>, vector<8x1x16xf32>,
    %c0_52 = arith.constant 0 : index
    %c0_53 = arith.constant 0 : index
    %c0_54 = arith.constant 0 : index
    %62 = vector.load %arg3[%c0_52, %c0_53, %c0_54] : memref<8x6x18xf32, #tpu.memory_space<vmem>>, vector<8x6x16xf32>
    %c0_55 = arith.constant 0 : index
    %c0_56 = arith.constant 0 : index
    %c1_57 = arith.constant 1 : index
    %63 = vector.load %arg3[%c0_55, %c0_56, %c1_57] : memref<8x6x18xf32, #tpu.memory_space<vmem>>, vector<8x6x16xf32>
    %64 = arith.maximumf %62, %63 : vector<8x6x16xf32>
    %c0_58 = arith.constant 0 : index
    %c0_59 = arith.constant 0 : index
    %c2_60 = arith.constant 2 : index
    %65 = vector.load %arg3[%c0_58, %c0_59, %c2_60] : memref<8x6x18xf32, #tpu.memory_space<vmem>>, vector<8x6x16xf32>
    %66 = arith.maximumf %64, %65 : vector<8x6x16xf32>
    %67 = vector.extract_strided_slice %66 {offsets = [0, 0, 0], sizes = [8, 6, 1], strides = [1, 1, 1]} : vector<8x6x16xf32> to vector<8x6x1xf32>
    %c0_61 = arith.constant 0 : index
    %c0_62 = arith.constant 0 : index
    %c0_63 = arith.constant 0 : index
    %68 = vector.load %arg2[%c0_61, %c0_62, %c0_63] : memref<8x6x6xf32, #tpu.memory_space<vmem>>, vector<8x6x1xf32>
    tpu.vector_store %arg2[%c0_61, %c0_62, %c0_63], %67 {strides = array<i32>} : memref<8x6x6xf32, #tpu.memory_space<vmem>>, vector<8x6x1xf32>,
    %69 = vector.extract_strided_slice %66 {offsets = [0, 0, 3], sizes = [8, 6, 1], strides = [1, 1, 1]} : vector<8x6x16xf32> to vector<8x6x1xf32>
    %c0_64 = arith.constant 0 : index
    %c0_65 = arith.constant 0 : index
    %c1_66 = arith.constant 1 : index
    %70 = vector.load %arg2[%c0_64, %c0_65, %c1_66] : memref<8x6x6xf32, #tpu.memory_space<vmem>>, vector<8x6x1xf32>
    tpu.vector_store %arg2[%c0_64, %c0_65, %c1_66], %69 {strides = array<i32>} : memref<8x6x6xf32, #tpu.memory_space<vmem>>, vector<8x6x1xf32>,
    %71 = vector.extract_strided_slice %66 {offsets = [0, 0, 6], sizes = [8, 6, 1], strides = [1, 1, 1]} : vector<8x6x16xf32> to vector<8x6x1xf32>
    %c0_67 = arith.constant 0 : index
    %c0_68 = arith.constant 0 : index
    %c2_69 = arith.constant 2 : index
    %72 = vector.load %arg2[%c0_67, %c0_68, %c2_69] : memref<8x6x6xf32, #tpu.memory_space<vmem>>, vector<8x6x1xf32>
    tpu.vector_store %arg2[%c0_67, %c0_68, %c2_69], %71 {strides = array<i32>} : memref<8x6x6xf32, #tpu.memory_space<vmem>>, vector<8x6x1xf32>,
    %73 = vector.extract_strided_slice %66 {offsets = [0, 0, 9], sizes = [8, 6, 1], strides = [1, 1, 1]} : vector<8x6x16xf32> to vector<8x6x1xf32>
    %c0_70 = arith.constant 0 : index
    %c0_71 = arith.constant 0 : index
    %c3_72 = arith.constant 3 : index
    %74 = vector.load %arg2[%c0_70, %c0_71, %c3_72] : memref<8x6x6xf32, #tpu.memory_space<vmem>>, vector<8x6x1xf32>
    tpu.vector_store %arg2[%c0_70, %c0_71, %c3_72], %73 {strides = array<i32>} : memref<8x6x6xf32, #tpu.memory_space<vmem>>, vector<8x6x1xf32>,
    %75 = vector.extract_strided_slice %66 {offsets = [0, 0, 12], sizes = [8, 6, 1], strides = [1, 1, 1]} : vector<8x6x16xf32> to vector<8x6x1xf32>
    %c0_73 = arith.constant 0 : index
    %c0_74 = arith.constant 0 : index
    %c4_75 = arith.constant 4 : index
    %76 = vector.load %arg2[%c0_73, %c0_74, %c4_75] : memref<8x6x6xf32, #tpu.memory_space<vmem>>, vector<8x6x1xf32>
    tpu.vector_store %arg2[%c0_73, %c0_74, %c4_75], %75 {strides = array<i32>} : memref<8x6x6xf32, #tpu.memory_space<vmem>>, vector<8x6x1xf32>,
    %77 = vector.extract_strided_slice %66 {offsets = [0, 0, 15], sizes = [8, 6, 1], strides = [1, 1, 1]} : vector<8x6x16xf32> to vector<8x6x1xf32>
    %c0_76 = arith.constant 0 : index
    %c0_77 = arith.constant 0 : index
    %c5_78 = arith.constant 5 : index
    %78 = vector.load %arg2[%c0_76, %c0_77, %c5_78] : memref<8x6x6xf32, #tpu.memory_space<vmem>>, vector<8x6x1xf32>
    tpu.vector_store %arg2[%c0_76, %c0_77, %c5_78], %77 {strides = array<i32>} : memref<8x6x6xf32, #tpu.memory_space<vmem>>, vector<8x6x1xf32>,
    return
  }
  func.func @transform_0(%arg0: i32) -> (i32, i32, i32) {
    %c0_i32 = arith.constant 0 : i32
    %c0_i32_0 = arith.constant 0 : i32
    %c0_i32_1 = arith.constant 0 : i32
    return %arg0, %c0_i32, %c0_i32_0 : i32, i32, i32
  }
  func.func @transform_1(%arg0: i32) -> (i32, i32, i32) {
    %c0_i32 = arith.constant 0 : i32
    %c0_i32_0 = arith.constant 0 : i32
    %c0_i32_1 = arith.constant 0 : i32
    return %arg0, %c0_i32, %c0_i32_0 : i32, i32, i32
  }
}

</mosaic_0001>

<llo_original>
// kernel: tpu_custom_call.1
$region0: #{tpu_custom_call.1}
  #allocation0 [shape = 'u32[]', space=smem, size = 0x4, offset = 0x4, fixed_abs, tag = 'smem constant byte address 0x4 - core index']
  #allocation1 [shape = 'u32[72,128]{1,0:T(1,128)}', space=vmem, size = 0x9000, scoped, tag = 'internal scratch']
  #allocation2 [shape = 'f32[8,6,18]{2,1,0:T(8,128)}', space=vmem, size = 0x8000, scoped, tag = 'scratch operand']
  %s0 = inlined_call_operand.hbm [shape: f32[8,16,16], index: 0, kind: input, shape index: {}]
  %s1 = inlined_call_operand.vmem [shape: f32[8,6,6], index: 1, kind: output, shape index: {}]
  %s2 = sld [smem:[#allocation0]]
  $region18: #{tpu_custom_call.1} parent=0
    _
  %s4 = ssub.s32 1, %s2
  %s5 = scalar_select 0, %s4, %s2
  $region1: #{tpu_custom_call.1} parent=0
    #allocation3 [shape = 'u8[65536]{0}', space=vmem, size = 0x10000, scoped, tag = 'input window, operand 0, single buffered']
    #allocation4 [shape = 's32[1]{0}', space=sflag, size = 0x4, scoped, tag = 'scoped memory for tpu_custom_call.1']
    %6 = vsyncpa [#allocation4], 0
    // Predicated region
    $region2: #{tpu_custom_call.1} parent=1 // pred_check
      _
    $region3: #{tpu_custom_call.1} parent=1 // pred_check_branch
      %8 = sbr.rel (0) target = $region5
    $region4: #{tpu_custom_call.1} parent=1 // pred_region
      %10 = vsyncadd [#allocation4], 0
      %s11 = sshll.u32 %s0, 4
      %s12 = int_to_ptr.hbm [resolvable:$true] %s11
      %s13 = sshll.u32 [#allocation3], 4
      %s14 = int_to_ptr.vmem [resolvable:$true] %s13
      %19 = dma.hbm_to_vmem [thread:$0]  %s12, 2048, %s14, [#allocation4], 128, 128, 8
    $region5: #{tpu_custom_call.1} parent=1 // pred_fallthru
      _
    // Predicated region
    $region6: #{tpu_custom_call.1} parent=1 // pred_check
      _
    $region7: #{tpu_custom_call.1} parent=1 // pred_check_branch
      %21 = sbr.rel (0) target = $region9
    $region8: #{tpu_custom_call.1} parent=1 // pred_region
      %23 = dma.done [#allocation4], 2048
    $region9: #{tpu_custom_call.1} parent=1 // pred_fallthru
      _
    %vm24 = vcmask 144512
    %25 = vst.msk [vmem:[#allocation2] sm:$0x3f] %vm24, -inf
    %26 = vst.msk [vmem:[#allocation2 + $0x8] sm:$0x3f] %vm24, -inf
    %27 = vst.msk [vmem:[#allocation2 + $0x10] sm:$0x3f] %vm24, -inf
    %28 = vst.msk [vmem:[#allocation2 + $0x18] sm:$0x3f] %vm24, -inf
    %29 = vst.msk [vmem:[#allocation2 + $0x20] sm:$0x3f] %vm24, -inf
    %30 = vst.msk [vmem:[#allocation2 + $0x28] sm:$0x3f] %vm24, -inf
    %31 = vst.msk [vmem:[#allocation2 + $0x30] sm:$0x3f] %vm24, -inf
    %32 = vst.msk [vmem:[#allocation2 + $0x38] sm:$0x3f] %vm24, -inf
    %v33 = vld [vmem:[#allocation3] sm:$0x1]
    %v34 = vld [vmem:[#allocation3 + $0x10] sm:$0x1]
    %v35 = vld [vmem:[#allocation3 + $0x20] sm:$0x1]
    %v36 = vld [vmem:[#allocation3 + $0x30] sm:$0x1]
    %v37 = vld [vmem:[#allocation3 + $0x40] sm:$0x1]
    %v38 = vld [vmem:[#allocation3 + $0x50] sm:$0x1]
    %v39 = vld [vmem:[#allocation3 + $0x60] sm:$0x1]
    %v40 = vld [vmem:[#allocation3 + $0x70] sm:$0x1]
    %v41 = vld [vmem:[#allocation3 + $0x1] sm:$0x1]
    %v42 = vld [vmem:[#allocation3 + $0x11] sm:$0x1]
    %v43 = vld [vmem:[#allocation3 + $0x21] sm:$0x1]
    %v44 = vld [vmem:[#allocation3 + $0x31] sm:$0x1]
    %v45 = vld [vmem:[#allocation3 + $0x41] sm:$0x1]
    %v46 = vld [vmem:[#allocation3 + $0x51] sm:$0x1]
    %v47 = vld [vmem:[#allocation3 + $0x61] sm:$0x1]
    %v48 = vld [vmem:[#allocation3 + $0x71] sm:$0x1]
    %v49 = vmax.f32 %v33, %v41
    %v50 = vmax.f32 %v34, %v42
    %v51 = vmax.f32 %v35, %v43
    %v52 = vmax.f32 %v36, %v44
    %v53 = vmax.f32 %v37, %v45
    %v54 = vmax.f32 %v38, %v46
    %v55 = vmax.f32 %v39, %v47
    %v56 = vmax.f32 %v40, %v48
    %v57 = vld [vmem:[#allocation3 + $0x2] sm:$0x1]
    %v58 = vld [vmem:[#allocation3 + $0x12] sm:$0x1]
    %v59 = vld [vmem:[#allocation3 + $0x22] sm:$0x1]
    %v60 = vld [vmem:[#allocation3 + $0x32] sm:$0x1]
    %v61 = vld [vmem:[#allocation3 + $0x42] sm:$0x1]
    %v62 = vld [vmem:[#allocation3 + $0x52] sm:$0x1]
    %v63 = vld [vmem:[#allocation3 + $0x62] sm:$0x1]
    %v64 = vld [vmem:[#allocation3 + $0x72] sm:$0x1]
    %v65 = vmax.f32 %v49, %v57
    %v66 = vmax.f32 %v50, %v58
    %v67 = vmax.f32 %v51, %v59
    %v68 = vmax.f32 %v52, %v60
    %v69 = vmax.f32 %v53, %v61
    %v70 = vmax.f32 %v54, %v62
    %v71 = vmax.f32 %v55, %v63
    %v72 = vmax.f32 %v56, %v64
    %vm73 = vcmask 122880
    %74 = vst.msk [vmem:[#allocation2] sm:$0x1] %vm73, %v65
    %75 = vst.msk [vmem:[#allocation2 + $0x8] sm:$0x1] %vm73, %v66
    %76 = vst.msk [vmem:[#allocation2 + $0x10] sm:$0x1] %vm73, %v67
    %77 = vst.msk [vmem:[#allocation2 + $0x18] sm:$0x1] %vm73, %v68
    %78 = vst.msk [vmem:[#allocation2 + $0x20] sm:$0x1] %vm73, %v69
    %79 = vst.msk [vmem:[#allocation2 + $0x28] sm:$0x1] %vm73, %v70
    %80 = vst.msk [vmem:[#allocation2 + $0x30] sm:$0x1] %vm73, %v71
    %81 = vst.msk [vmem:[#allocation2 + $0x38] sm:$0x1] %vm73, %v72
    %v82 = vld [vmem:[#allocation3 + $0x3] sm:$0x1]
    %v83 = vld [vmem:[#allocation3 + $0x13] sm:$0x1]
    %v84 = vld [vmem:[#allocation3 + $0x23] sm:$0x1]
    %v85 = vld [vmem:[#allocation3 + $0x33] sm:$0x1]
    %v86 = vld [vmem:[#allocation3 + $0x43] sm:$0x1]
    %v87 = vld [vmem:[#allocation3 + $0x53] sm:$0x1]
    %v88 = vld [vmem:[#allocation3 + $0x63] sm:$0x1]
    %v89 = vld [vmem:[#allocation3 + $0x73] sm:$0x1]
    %v90 = vld [vmem:[#allocation3 + $0x4] sm:$0x1]
    %v91 = vld [vmem:[#allocation3 + $0x14] sm:$0x1]
    %v92 = vld [vmem:[#allocation3 + $0x24] sm:$0x1]
    %v93 = vld [vmem:[#allocation3 + $0x34] sm:$0x1]
    %v94 = vld [vmem:[#allocation3 + $0x44] sm:$0x1]
    %v95 = vld [vmem:[#allocation3 + $0x54] sm:$0x1]
    %v96 = vld [vmem:[#allocation3 + $0x64] sm:$0x1]
    %v97 = vld [vmem:[#allocation3 + $0x74] sm:$0x1]
    %v98 = vmax.f32 %v82, %v90
    %v99 = vmax.f32 %v83, %v91
    %v100 = vmax.f32 %v84, %v92
    %v101 = vmax.f32 %v85, %v93
    %v102 = vmax.f32 %v86, %v94
    %v103 = vmax.f32 %v87, %v95
    %v104 = vmax.f32 %v88, %v96
    %v105 = vmax.f32 %v89, %v97
    %v106 = vld [vmem:[#allocation3 + $0x5] sm:$0x1]
    %v107 = vld [vmem:[#allocation3 + $0x15] sm:$0x1]
    %v108 = vld [vmem:[#allocation3 + $0x25] sm:$0x1]
    %v109 = vld [vmem:[#allocation3 + $0x35] sm:$0x1]
    %v110 = vld [vmem:[#allocation3 + $0x45] sm:$0x1]
    %v111 = vld [vmem:[#allocation3 + $0x55] sm:$0x1]
    %v112 = vld [vmem:[#allocation3 + $0x65] sm:$0x1]
    %v113 = vld [vmem:[#allocation3 + $0x75] sm:$0x1]
    %v114 = vmax.f32 %v98, %v106
    %v115 = vmax.f32 %v99, %v107
    %v116 = vmax.f32 %v100, %v108
    %v117 = vmax.f32 %v101, %v109
    %v118 = vmax.f32 %v102, %v110
    %v119 = vmax.f32 %v103, %v111
    %v120 = vmax.f32 %v104, %v112
    %v121 = vmax.f32 %v105, %v113
    %122 = vst.msk [vmem:[#allocation2 + $0x1] sm:$0x1] %vm73, %v114
    %123 = vst.msk [vmem:[#allocation2 + $0x9] sm:$0x1] %vm73, %v115
    %124 = vst.msk [vmem:[#allocation2 + $0x11] sm:$0x1] %vm73, %v116
    %125 = vst.msk [vmem:[#allocation2 + $0x19] sm:$0x1] %vm73, %v117
    %126 = vst.msk [vmem:[#allocation2 + $0x21] sm:$0x1] %vm73, %v118
    %127 = vst.msk [vmem:[#allocation2 + $0x29] sm:$0x1] %vm73, %v119
    %128 = vst.msk [vmem:[#allocation2 + $0x31] sm:$0x1] %vm73, %v120
    %129 = vst.msk [vmem:[#allocation2 + $0x39] sm:$0x1] %vm73, %v121
    %v130 = vld [vmem:[#allocation3 + $0x6] sm:$0x1]
    %v131 = vld [vmem:[#allocation3 + $0x16] sm:$0x1]
    %v132 = vld [vmem:[#allocation3 + $0x26] sm:$0x1]
    %v133 = vld [vmem:[#allocation3 + $0x36] sm:$0x1]
    %v134 = vld [vmem:[#allocation3 + $0x46] sm:$0x1]
    %v135 = vld [vmem:[#allocation3 + $0x56] sm:$0x1]
    %v136 = vld [vmem:[#allocation3 + $0x66] sm:$0x1]
    %v137 = vld [vmem:[#allocation3 + $0x76] sm:$0x1]
    %v138 = vld [vmem:[#allocation3 + $0x7] sm:$0x1]
    %v139 = vld [vmem:[#allocation3 + $0x17] sm:$0x1]
    %v140 = vld [vmem:[#allocation3 + $0x27] sm:$0x1]
    %v141 = vld [vmem:[#allocation3 + $0x37] sm:$0x1]
    %v142 = vld [vmem:[#allocation3 + $0x47] sm:$0x1]
    %v143 = vld [vmem:[#allocation3 + $0x57] sm:$0x1]
    %v144 = vld [vmem:[#allocation3 + $0x67] sm:$0x1]
    %v145 = vld [vmem:[#allocation3 + $0x77] sm:$0x1]
    %v146 = vmax.f32 %v130, %v138
    %v147 = vmax.f32 %v131, %v139
    %v148 = vmax.f32 %v132, %v140
    %v149 = vmax.f32 %v133, %v141
    %v150 = vmax.f32 %v134, %v142
    %v151 = vmax.f32 %v135, %v143
    %v152 = vmax.f32 %v136, %v144
    %v153 = vmax.f32 %v137, %v145
    %v154 = vld [vmem:[#allocation3 + $0x8] sm:$0x1]
    %v155 = vld [vmem:[#allocation3 + $0x18] sm:$0x1]
    %v156 = vld [vmem:[#allocation3 + $0x28] sm:$0x1]
    %v157 = vld [vmem:[#allocation3 + $0x38] sm:$0x1]
    %v158 = vld [vmem:[#allocation3 + $0x48] sm:$0x1]
    %v159 = vld [vmem:[#allocation3 + $0x58] sm:$0x1]
    %v160 = vld [vmem:[#allocation3 + $0x68] sm:$0x1]
    %v161 = vld [vmem:[#allocation3 + $0x78] sm:$0x1]
    %v162 = vmax.f32 %v146, %v154
    %v163 = vmax.f32 %v147, %v155
    %v164 = vmax.f32 %v148, %v156
    %v165 = vmax.f32 %v149, %v157
    %v166 = vmax.f32 %v150, %v158
    %v167 = vmax.f32 %v151, %v159
    %v168 = vmax.f32 %v152, %v160
    %v169 = vmax.f32 %v153, %v161
    %170 = vst.msk [vmem:[#allocation2 + $0x2] sm:$0x1] %vm73, %v162
    %171 = vst.msk [vmem:[#allocation2 + $0xa] sm:$0x1] %vm73, %v163
    %172 = vst.msk [vmem:[#allocation2 + $0x12] sm:$0x1] %vm73, %v164
    %173 = vst.msk [vmem:[#allocation2 + $0x1a] sm:$0x1] %vm73, %v165
    %174 = vst.msk [vmem:[#allocation2 + $0x22] sm:$0x1] %vm73, %v166
    %175 = vst.msk [vmem:[#allocation2 + $0x2a] sm:$0x1] %vm73, %v167
    %176 = vst.msk [vmem:[#allocation2 + $0x32] sm:$0x1] %vm73, %v168
    %177 = vst.msk [vmem:[#allocation2 + $0x3a] sm:$0x1] %vm73, %v169
    %v178 = vld [vmem:[#allocation3 + $0x9] sm:$0x1]
    %v179 = vld [vmem:[#allocation3 + $0x19] sm:$0x1]
    %v180 = vld [vmem:[#allocation3 + $0x29] sm:$0x1]
    %v181 = vld [vmem:[#allocation3 + $0x39] sm:$0x1]
    %v182 = vld [vmem:[#allocation3 + $0x49] sm:$0x1]
    %v183 = vld [vmem:[#allocation3 + $0x59] sm:$0x1]
    %v184 = vld [vmem:[#allocation3 + $0x69] sm:$0x1]
    %v185 = vld [vmem:[#allocation3 + $0x79] sm:$0x1]
    %v186 = vld [vmem:[#allocation3 + $0xa] sm:$0x1]
    %v187 = vld [vmem:[#allocation3 + $0x1a] sm:$0x1]
    %v188 = vld [vmem:[#allocation3 + $0x2a] sm:$0x1]
    %v189 = vld [vmem:[#allocation3 + $0x3a] sm:$0x1]
    %v190 = vld [vmem:[#allocation3 + $0x4a] sm:$0x1]
    %v191 = vld [vmem:[#allocation3 + $0x5a] sm:$0x1]
    %v192 = vld [vmem:[#allocation3 + $0x6a] sm:$0x1]
    %v193 = vld [vmem:[#allocation3 + $0x7a] sm:$0x1]
    %v194 = vmax.f32 %v178, %v186
    %v195 = vmax.f32 %v179, %v187
    %v196 = vmax.f32 %v180, %v188
    %v197 = vmax.f32 %v181, %v189
    %v198 = vmax.f32 %v182, %v190
    %v199 = vmax.f32 %v183, %v191
    %v200 = vmax.f32 %v184, %v192
    %v201 = vmax.f32 %v185, %v193
    %v202 = vld [vmem:[#allocation3 + $0xb] sm:$0x1]
    %v203 = vld [vmem:[#allocation3 + $0x1b] sm:$0x1]
    %v204 = vld [vmem:[#allocation3 + $0x2b] sm:$0x1]
    %v205 = vld [vmem:[#allocation3 + $0x3b] sm:$0x1]
    %v206 = vld [vmem:[#allocation3 + $0x4b] sm:$0x1]
    %v207 = vld [vmem:[#allocation3 + $0x5b] sm:$0x1]
    %v208 = vld [vmem:[#allocation3 + $0x6b] sm:$0x1]
    %v209 = vld [vmem:[#allocation3 + $0x7b] sm:$0x1]
    %v210 = vmax.f32 %v194, %v202
    %v211 = vmax.f32 %v195, %v203
    %v212 = vmax.f32 %v196, %v204
    %v213 = vmax.f32 %v197, %v205
    %v214 = vmax.f32 %v198, %v206
    %v215 = vmax.f32 %v199, %v207
    %v216 = vmax.f32 %v200, %v208
    %v217 = vmax.f32 %v201, %v209
    %218 = vst.msk [vmem:[#allocation2 + $0x3] sm:$0x1] %vm73, %v210
    %219 = vst.msk [vmem:[#allocation2 + $0xb] sm:$0x1] %vm73, %v211
    %220 = vst.msk [vmem:[#allocation2 + $0x13] sm:$0x1] %vm73, %v212
    %221 = vst.msk [vmem:[#allocation2 + $0x1b] sm:$0x1] %vm73, %v213
    %222 = vst.msk [vmem:[#allocation2 + $0x23] sm:$0x1] %vm73, %v214
    %223 = vst.msk [vmem:[#allocation2 + $0x2b] sm:$0x1] %vm73, %v215
    %224 = vst.msk [vmem:[#allocation2 + $0x33] sm:$0x1] %vm73, %v216
    %225 = vst.msk [vmem:[#allocation2 + $0x3b] sm:$0x1] %vm73, %v217
    %v226 = vld [vmem:[#allocation3 + $0xc] sm:$0x1]
    %v227 = vld [vmem:[#allocation3 + $0x1c] sm:$0x1]
    %v228 = vld [vmem:[#allocation3 + $0x2c] sm:$0x1]
    %v229 = vld [vmem:[#allocation3 + $0x3c] sm:$0x1]
    %v230 = vld [vmem:[#allocation3 + $0x4c] sm:$0x1]
    %v231 = vld [vmem:[#allocation3 + $0x5c] sm:$0x1]
    %v232 = vld [vmem:[#allocation3 + $0x6c] sm:$0x1]
    %v233 = vld [vmem:[#allocation3 + $0x7c] sm:$0x1]
    %v234 = vld [vmem:[#allocation3 + $0xd] sm:$0x1]
    %v235 = vld [vmem:[#allocation3 + $0x1d] sm:$0x1]
    %v236 = vld [vmem:[#allocation3 + $0x2d] sm:$0x1]
    %v237 = vld [vmem:[#allocation3 + $0x3d] sm:$0x1]
    %v238 = vld [vmem:[#allocation3 + $0x4d] sm:$0x1]
    %v239 = vld [vmem:[#allocation3 + $0x5d] sm:$0x1]
    %v240 = vld [vmem:[#allocation3 + $0x6d] sm:$0x1]
    %v241 = vld [vmem:[#allocation3 + $0x7d] sm:$0x1]
    %v242 = vmax.f32 %v226, %v234
    %v243 = vmax.f32 %v227, %v235
    %v244 = vmax.f32 %v228, %v236
    %v245 = vmax.f32 %v229, %v237
    %v246 = vmax.f32 %v230, %v238
    %v247 = vmax.f32 %v231, %v239
    %v248 = vmax.f32 %v232, %v240
    %v249 = vmax.f32 %v233, %v241
    %v250 = vld [vmem:[#allocation3 + $0xe] sm:$0x1]
    %v251 = vld [vmem:[#allocation3 + $0x1e] sm:$0x1]
    %v252 = vld [vmem:[#allocation3 + $0x2e] sm:$0x1]
    %v253 = vld [vmem:[#allocation3 + $0x3e] sm:$0x1]
    %v254 = vld [vmem:[#allocation3 + $0x4e] sm:$0x1]
    %v255 = vld [vmem:[#allocation3 + $0x5e] sm:$0x1]
    %v256 = vld [vmem:[#allocation3 + $0x6e] sm:$0x1]
    %v257 = vld [vmem:[#allocation3 + $0x7e] sm:$0x1]
    %v258 = vmax.f32 %v242, %v250
    %v259 = vmax.f32 %v243, %v251
    %v260 = vmax.f32 %v244, %v252
    %v261 = vmax.f32 %v245, %v253
    %v262 = vmax.f32 %v246, %v254
    %v263 = vmax.f32 %v247, %v255
    %v264 = vmax.f32 %v248, %v256
    %v265 = vmax.f32 %v249, %v257
    %266 = vst.msk [vmem:[#allocation2 + $0x4] sm:$0x1] %vm73, %v258
    %267 = vst.msk [vmem:[#allocation2 + $0xc] sm:$0x1] %vm73, %v259
    %268 = vst.msk [vmem:[#allocation2 + $0x14] sm:$0x1] %vm73, %v260
    %269 = vst.msk [vmem:[#allocation2 + $0x1c] sm:$0x1] %vm73, %v261
    %270 = vst.msk [vmem:[#allocation2 + $0x24] sm:$0x1] %vm73, %v262
    %271 = vst.msk [vmem:[#allocation2 + $0x2c] sm:$0x1] %vm73, %v263
    %272 = vst.msk [vmem:[#allocation2 + $0x34] sm:$0x1] %vm73, %v264
    %273 = vst.msk [vmem:[#allocation2 + $0x3c] sm:$0x1] %vm73, %v265
    %v274 = vld [vmem:[#allocation3 + $0xf] sm:$0x1]
    %v275 = vld [vmem:[#allocation3 + $0x1f] sm:$0x1]
    %v276 = vld [vmem:[#allocation3 + $0x2f] sm:$0x1]
    %v277 = vld [vmem:[#allocation3 + $0x3f] sm:$0x1]
    %v278 = vld [vmem:[#allocation3 + $0x4f] sm:$0x1]
    %v279 = vld [vmem:[#allocation3 + $0x5f] sm:$0x1]
    %v280 = vld [vmem:[#allocation3 + $0x6f] sm:$0x1]
    %v281 = vld [vmem:[#allocation3 + $0x7f] sm:$0x1]
    %282 = vst.msk [vmem:[#allocation2 + $0x5] sm:$0x1] %vm73, %v274
    %283 = vst.msk [vmem:[#allocation2 + $0xd] sm:$0x1] %vm73, %v275
    %284 = vst.msk [vmem:[#allocation2 + $0x15] sm:$0x1] %vm73, %v276
    %285 = vst.msk [vmem:[#allocation2 + $0x1d] sm:$0x1] %vm73, %v277
    %286 = vst.msk [vmem:[#allocation2 + $0x25] sm:$0x1] %vm73, %v278
    %287 = vst.msk [vmem:[#allocation2 + $0x2d] sm:$0x1] %vm73, %v279
    %288 = vst.msk [vmem:[#allocation2 + $0x35] sm:$0x1] %vm73, %v280
    %289 = vst.msk [vmem:[#allocation2 + $0x3d] sm:$0x1] %vm73, %v281
    %v290 = vld [vmem:[#allocation2] sm:$0x3f]
    %v291 = vld [vmem:[#allocation2 + $0x8] sm:$0x3f]
    %v292 = vld [vmem:[#allocation2 + $0x10] sm:$0x3f]
    %v293 = vld [vmem:[#allocation2 + $0x18] sm:$0x3f]
    %v294 = vld [vmem:[#allocation2 + $0x20] sm:$0x3f]
    %v295 = vld [vmem:[#allocation2 + $0x28] sm:$0x3f]
    %v296 = vld [vmem:[#allocation2 + $0x30] sm:$0x3f]
    %v297 = vld [vmem:[#allocation2 + $0x38] sm:$0x3f]
    %306 = vrot.lane.b32.xlu0 %v290, 127
    %v307 = vpop.permute.xlu0 %306
    %308 = vrot.lane.b32.xlu0 %v291, 127
    %v309 = vpop.permute.xlu0 %308
    %310 = vrot.lane.b32.xlu0 %v292, 127
    %v311 = vpop.permute.xlu0 %310
    %312 = vrot.lane.b32.xlu0 %v293, 127
    %v313 = vpop.permute.xlu0 %312
    %314 = vrot.lane.b32.xlu0 %v294, 127
    %v315 = vpop.permute.xlu0 %314
    %316 = vrot.lane.b32.xlu0 %v295, 127
    %v317 = vpop.permute.xlu0 %316
    %318 = vrot.lane.b32.xlu0 %v296, 127
    %v319 = vpop.permute.xlu0 %318
    %320 = vrot.lane.b32.xlu0 %v297, 127
    %v321 = vpop.permute.xlu0 %320
    %v330 = vmax.f32 %v290, %v307
    %v331 = vmax.f32 %v291, %v309
    %v332 = vmax.f32 %v292, %v311
    %v333 = vmax.f32 %v293, %v313
    %v334 = vmax.f32 %v294, %v315
    %v335 = vmax.f32 %v295, %v317
    %v336 = vmax.f32 %v296, %v319
    %v337 = vmax.f32 %v297, %v321
    %338 = vrot.lane.b32.xlu0 %v290, 126
    %v339 = vpop.permute.xlu0 %338
    %340 = vrot.lane.b32.xlu0 %v291, 126
    %v341 = vpop.permute.xlu0 %340
    %342 = vrot.lane.b32.xlu0 %v292, 126
    %v343 = vpop.permute.xlu0 %342
    %344 = vrot.lane.b32.xlu0 %v293, 126
    %v345 = vpop.permute.xlu0 %344
    %346 = vrot.lane.b32.xlu0 %v294, 126
    %v347 = vpop.permute.xlu0 %346
    %348 = vrot.lane.b32.xlu0 %v295, 126
    %v349 = vpop.permute.xlu0 %348
    %350 = vrot.lane.b32.xlu0 %v296, 126
    %v351 = vpop.permute.xlu0 %350
    %352 = vrot.lane.b32.xlu0 %v297, 126
    %v353 = vpop.permute.xlu0 %352
    %v362 = vmax.f32 %v330, %v339
    %v363 = vmax.f32 %v331, %v341
    %v364 = vmax.f32 %v332, %v343
    %v365 = vmax.f32 %v333, %v345
    %v366 = vmax.f32 %v334, %v347
    %v367 = vmax.f32 %v335, %v349
    %v368 = vmax.f32 %v336, %v351
    %v369 = vmax.f32 %v337, %v353
    %vm370 = vcmask 5120
    %371 = vst.msk [vmem:[%s1] sm:$0x3f] %vm370, %v362
    %372 = vst.msk [vmem:[%s1 + $0x8] sm:$0x3f] %vm370, %v363
    %373 = vst.msk [vmem:[%s1 + $0x10] sm:$0x3f] %vm370, %v364
    %374 = vst.msk [vmem:[%s1 + $0x18] sm:$0x3f] %vm370, %v365
    %375 = vst.msk [vmem:[%s1 + $0x20] sm:$0x3f] %vm370, %v366
    %376 = vst.msk [vmem:[%s1 + $0x28] sm:$0x3f] %vm370, %v367
    %377 = vst.msk [vmem:[%s1 + $0x30] sm:$0x3f] %vm370, %v368
    %378 = vst.msk [vmem:[%s1 + $0x38] sm:$0x3f] %vm370, %v369
    %387 = vrot.lane.b32.xlu0 %v362, 126
    %v388 = vpop.permute.xlu0 %387
    %389 = vrot.lane.b32.xlu0 %v363, 126
    %v390 = vpop.permute.xlu0 %389
    %391 = vrot.lane.b32.xlu0 %v364, 126
    %v392 = vpop.permute.xlu0 %391
    %393 = vrot.lane.b32.xlu0 %v365, 126
    %v394 = vpop.permute.xlu0 %393
    %395 = vrot.lane.b32.xlu0 %v366, 126
    %v396 = vpop.permute.xlu0 %395
    %397 = vrot.lane.b32.xlu0 %v367, 126
    %v398 = vpop.permute.xlu0 %397
    %399 = vrot.lane.b32.xlu0 %v368, 126
    %v400 = vpop.permute.xlu0 %399
    %401 = vrot.lane.b32.xlu0 %v369, 126
    %v402 = vpop.permute.xlu0 %401
    %vm411 = vcmask 13320
    %412 = vst.msk [vmem:[%s1] sm:$0x3f] %vm411, %v388
    %413 = vst.msk [vmem:[%s1 + $0x8] sm:$0x3f] %vm411, %v390
    %414 = vst.msk [vmem:[%s1 + $0x10] sm:$0x3f] %vm411, %v392
    %415 = vst.msk [vmem:[%s1 + $0x18] sm:$0x3f] %vm411, %v394
    %416 = vst.msk [vmem:[%s1 + $0x20] sm:$0x3f] %vm411, %v396
    %417 = vst.msk [vmem:[%s1 + $0x28] sm:$0x3f] %vm411, %v398
    %418 = vst.msk [vmem:[%s1 + $0x30] sm:$0x3f] %vm411, %v400
    %419 = vst.msk [vmem:[%s1 + $0x38] sm:$0x3f] %vm411, %v402
    %420 = vrot.lane.b32.xlu0 %v362, 124
    %v421 = vpop.permute.xlu0 %420
    %422 = vrot.lane.b32.xlu0 %v363, 124
    %v423 = vpop.permute.xlu0 %422
    %424 = vrot.lane.b32.xlu0 %v364, 124
    %v425 = vpop.permute.xlu0 %424
    %426 = vrot.lane.b32.xlu0 %v365, 124
    %v427 = vpop.permute.xlu0 %426
    %428 = vrot.lane.b32.xlu0 %v366, 124
    %v429 = vpop.permute.xlu0 %428
    %430 = vrot.lane.b32.xlu0 %v367, 124
    %v431 = vpop.permute.xlu0 %430
    %432 = vrot.lane.b32.xlu0 %v368, 124
    %v433 = vpop.permute.xlu0 %432
    %434 = vrot.lane.b32.xlu0 %v369, 124
    %v435 = vpop.permute.xlu0 %434
    %vm444 = vcmask 21520
    %445 = vst.msk [vmem:[%s1] sm:$0x3f] %vm444, %v421
    %446 = vst.msk [vmem:[%s1 + $0x8] sm:$0x3f] %vm444, %v423
    %447 = vst.msk [vmem:[%s1 + $0x10] sm:$0x3f] %vm444, %v425
    %448 = vst.msk [vmem:[%s1 + $0x18] sm:$0x3f] %vm444, %v427
    %449 = vst.msk [vmem:[%s1 + $0x20] sm:$0x3f] %vm444, %v429
    %450 = vst.msk [vmem:[%s1 + $0x28] sm:$0x3f] %vm444, %v431
    %451 = vst.msk [vmem:[%s1 + $0x30] sm:$0x3f] %vm444, %v433
    %452 = vst.msk [vmem:[%s1 + $0x38] sm:$0x3f] %vm444, %v435
    %453 = vrot.lane.b32.xlu0 %v362, 122
    %v454 = vpop.permute.xlu0 %453
    %455 = vrot.lane.b32.xlu0 %v363, 122
    %v456 = vpop.permute.xlu0 %455
    %457 = vrot.lane.b32.xlu0 %v364, 122
    %v458 = vpop.permute.xlu0 %457
    %459 = vrot.lane.b32.xlu0 %v365, 122
    %v460 = vpop.permute.xlu0 %459
    %461 = vrot.lane.b32.xlu0 %v366, 122
    %v462 = vpop.permute.xlu0 %461
    %463 = vrot.lane.b32.xlu0 %v367, 122
    %v464 = vpop.permute.xlu0 %463
    %465 = vrot.lane.b32.xlu0 %v368, 122
    %v466 = vpop.permute.xlu0 %465
    %467 = vrot.lane.b32.xlu0 %v369, 122
    %v468 = vpop.permute.xlu0 %467
    %vm477 = vcmask 29720
    %478 = vst.msk [vmem:[%s1] sm:$0x3f] %vm477, %v454
    %479 = vst.msk [vmem:[%s1 + $0x8] sm:$0x3f] %vm477, %v456
    %480 = vst.msk [vmem:[%s1 + $0x10] sm:$0x3f] %vm477, %v458
    %481 = vst.msk [vmem:[%s1 + $0x18] sm:$0x3f] %vm477, %v460
    %482 = vst.msk [vmem:[%s1 + $0x20] sm:$0x3f] %vm477, %v462
    %483 = vst.msk [vmem:[%s1 + $0x28] sm:$0x3f] %vm477, %v464
    %484 = vst.msk [vmem:[%s1 + $0x30] sm:$0x3f] %vm477, %v466
    %485 = vst.msk [vmem:[%s1 + $0x38] sm:$0x3f] %vm477, %v468
    %486 = vrot.lane.b32.xlu0 %v362, 120
    %v487 = vpop.permute.xlu0 %486
    %488 = vrot.lane.b32.xlu0 %v363, 120
    %v489 = vpop.permute.xlu0 %488
    %490 = vrot.lane.b32.xlu0 %v364, 120
    %v491 = vpop.permute.xlu0 %490
    %492 = vrot.lane.b32.xlu0 %v365, 120
    %v493 = vpop.permute.xlu0 %492
    %494 = vrot.lane.b32.xlu0 %v366, 120
    %v495 = vpop.permute.xlu0 %494
    %496 = vrot.lane.b32.xlu0 %v367, 120
    %v497 = vpop.permute.xlu0 %496
    %498 = vrot.lane.b32.xlu0 %v368, 120
    %v499 = vpop.permute.xlu0 %498
    %500 = vrot.lane.b32.xlu0 %v369, 120
    %v501 = vpop.permute.xlu0 %500
    %vm510 = vcmask 37920
    %511 = vst.msk [vmem:[%s1] sm:$0x3f] %vm510, %v487
    %512 = vst.msk [vmem:[%s1 + $0x8] sm:$0x3f] %vm510, %v489
    %513 = vst.msk [vmem:[%s1 + $0x10] sm:$0x3f] %vm510, %v491
    %514 = vst.msk [vmem:[%s1 + $0x18] sm:$0x3f] %vm510, %v493
    %515 = vst.msk [vmem:[%s1 + $0x20] sm:$0x3f] %vm510, %v495
    %516 = vst.msk [vmem:[%s1 + $0x28] sm:$0x3f] %vm510, %v497
    %517 = vst.msk [vmem:[%s1 + $0x30] sm:$0x3f] %vm510, %v499
    %518 = vst.msk [vmem:[%s1 + $0x38] sm:$0x3f] %vm510, %v501
    %519 = vrot.lane.b32.xlu0 %v362, 118
    %v520 = vpop.permute.xlu0 %519
    %521 = vrot.lane.b32.xlu0 %v363, 118
    %v522 = vpop.permute.xlu0 %521
    %523 = vrot.lane.b32.xlu0 %v364, 118
    %v524 = vpop.permute.xlu0 %523
    %525 = vrot.lane.b32.xlu0 %v365, 118
    %v526 = vpop.permute.xlu0 %525
    %527 = vrot.lane.b32.xlu0 %v366, 118
    %v528 = vpop.permute.xlu0 %527
    %529 = vrot.lane.b32.xlu0 %v367, 118
    %v530 = vpop.permute.xlu0 %529
    %531 = vrot.lane.b32.xlu0 %v368, 118
    %v532 = vpop.permute.xlu0 %531
    %533 = vrot.lane.b32.xlu0 %v369, 118
    %v534 = vpop.permute.xlu0 %533
    %vm543 = vcmask 46120
    %544 = vst.msk [vmem:[%s1] sm:$0x3f] %vm543, %v520
    %545 = vst.msk [vmem:[%s1 + $0x8] sm:$0x3f] %vm543, %v522
    %546 = vst.msk [vmem:[%s1 + $0x10] sm:$0x3f] %vm543, %v524
    %547 = vst.msk [vmem:[%s1 + $0x18] sm:$0x3f] %vm543, %v526
    %548 = vst.msk [vmem:[%s1 + $0x20] sm:$0x3f] %vm543, %v528
    %549 = vst.msk [vmem:[%s1 + $0x28] sm:$0x3f] %vm543, %v530
    %550 = vst.msk [vmem:[%s1 + $0x30] sm:$0x3f] %vm543, %v532
    %551 = vst.msk [vmem:[%s1 + $0x38] sm:$0x3f] %vm543, %v534
    // Predicated region
    $region10: #{tpu_custom_call.1} parent=1 // pred_check
      _
    $region11: #{tpu_custom_call.1} parent=1 // pred_check_branch
      %553 = sbr.rel (0) target = $region13
    $region12: #{tpu_custom_call.1} parent=1 // pred_region
      _
    $region13: #{tpu_custom_call.1} parent=1 // pred_fallthru
      _
    // Predicated region
    $region14: #{tpu_custom_call.1} parent=1 // pred_check
      _
    $region15: #{tpu_custom_call.1} parent=1 // pred_check_branch
      %555 = sbr.rel (0) target = $region17
    $region16: #{tpu_custom_call.1} parent=1 // pred_region
      _
    $region17: #{tpu_custom_call.1} parent=1 // pred_fallthru
      _
    %556 = vsyncpa [#allocation4], 1

</llo_original>
